<compile_context>
chip_gen: v5e
topology: v5e:2x2
jax: 0.10.0
libtpu: 0.0.40
codegen_flags: <defaults>
</compile_context>

<pallas_src>
import math

import jax
import jax.numpy as jnp
from jax import lax
from jax.experimental import pallas as pl
from jax.experimental.pallas import tpu as pltpu


def _round_up(v, m):
    return ((v + m - 1) // m) * m


def _linear_norm_kernel(x_ref, w_ref, b_ref, o_ref, acc_ref, ssq_ref):
    """Tiled ((x @ W_kn) * rsqrt(sum(x**2, axis=1))) + b with K accumulation."""
    k = pl.program_id(2)

    @pl.when(k == 0)
    def _():
        acc_ref[...] = jnp.zeros_like(acc_ref)
        ssq_ref[...] = jnp.zeros_like(ssq_ref)

    x = x_ref[...]                      # (tm, tk), native dtype -> MXU
    w = w_ref[...]                      # (tk, tn), native dtype -> MXU

    # Pure MXU accumulate (weight already (K, N): no in-kernel transpose).
    acc_ref[...] += jnp.dot(x, w, preferred_element_type=jnp.float32)

    # Accumulate sum of squares over the (tiled) feature dim for the L2 norm.
    # VPU mults + XLU lane-reduce; ~3% of the MXU work per step, hides in the
    # slack of the matmul-bound bundle.
    xf = x.astype(jnp.float32)
    ssq_ref[...] += jnp.sum(xf * xf, axis=1, keepdims=True)

    @pl.when(k == pl.num_programs(2) - 1)
    def _():
        inv_norm = lax.rsqrt(ssq_ref[...])                     # (tm, 1), EUP
        y = acc_ref[...] * inv_norm + b_ref[...].astype(jnp.float32)
        o_ref[...] = y.astype(o_ref.dtype)


def linear_forward(x, weight, bias, *, tm=256, tn=512, tk=512):
    """x: (B, K), weight: (N, K) [torch.nn.Linear layout], bias: (N,) -> (B, N)."""
    B, K = x.shape
    N, K2 = weight.shape
    assert K == K2

    # Pre-transpose weight once in the wrapper: kernel sees lane-dense (K, N).
    w_kn = weight.T

    # Clamp tiles to the (padded) problem size; keep (8, 128) alignment.
    tm = min(tm, _round_up(B, 8))
    tn = min(tn, _round_up(N, 128))
    tk = min(tk, _round_up(K, 128))

    Bp = _round_up(B, tm)
    Kp = _round_up(K, tk)
    Np = _round_up(N, tn)

    xp = x if (Bp == B and Kp == K) else jnp.pad(x, ((0, Bp - B), (0, Kp - K)))
    wp = w_kn if (Kp == K and Np == N) else jnp.pad(
        w_kn, ((0, Kp - K), (0, Np - N)))
    bp = (bias if Np == N else jnp.pad(bias, (0, Np - N))).reshape(1, Np)

    grid = (Bp // tm, Np // tn, Kp // tk)

    out = pl.pallas_call(
        _linear_norm_kernel,
        out_shape=jax.ShapeDtypeStruct((Bp, Np), x.dtype),
        grid_spec=pltpu.PrefetchScalarGridSpec(
            num_scalar_prefetch=0,
            grid=grid,
            in_specs=[
                pl.BlockSpec((tm, tk), lambda i, j, k: (i, k)),   # x tile
                pl.BlockSpec((tk, tn), lambda i, j, k: (k, j)),   # W (K,N) tile
                pl.BlockSpec((1, tn), lambda i, j, k: (0, j)),    # bias tile
            ],
            out_specs=pl.BlockSpec((tm, tn), lambda i, j, k: (i, j)),
            scratch_shapes=[
                pltpu.VMEM((tm, tn), jnp.float32),   # matmul accumulator
                pltpu.VMEM((tm, 1), jnp.float32),    # sum(x**2) accumulator
            ],
        ),
        compiler_params=pltpu.CompilerParams(
            dimension_semantics=("parallel", "parallel", "arbitrary")),
    )(xp, wp, bp)

    if Bp != B or Np != N:
        out = out[:B, :N]
    return out


def init_params(key, in_channel, out_channel):
    """Deterministic init matching the module's __init__ shapes.

    weight: xavier_uniform_ with gain=0.01 -> U(-a, a), a = gain*sqrt(6/(fan_in+fan_out))
    bias:   torch.nn.Linear default -> U(-1/sqrt(fan_in), 1/sqrt(fan_in))
    """
    kw, kb = jax.random.split(key)
    a = 0.01 * math.sqrt(6.0 / (in_channel + out_channel))
    weight = jax.random.uniform(
        kw, (out_channel, in_channel), minval=-a, maxval=a, dtype=jnp.float32)
    bb = 1.0 / math.sqrt(in_channel)
    bias = jax.random.uniform(
        kb, (out_channel,), minval=-bb, maxval=bb, dtype=jnp.float32)
    return weight, bias


if __name__ == "__main__":
    key = jax.random.PRNGKey(0)
    k_x, k_p = jax.random.split(key)

    B, IN, OUT = 8, 32, 16
    x = jax.random.normal(k_x, (B, IN), dtype=jnp.float32)
    weight, bias = init_params(k_p, IN, OUT)

    out = linear_forward(x, weight, bias)
    out = jax.block_until_ready(out)

    # Reference check in plain JAX (same semantics as the torch module).
    ref = (x @ weight.T) / jnp.linalg.norm(x, axis=1, keepdims=True) + bias
    assert out.shape == (B, OUT)
    assert jnp.allclose(out, ref, atol=1e-5, rtol=1e-5), "mismatch vs reference"

    # Second check at a shape that exercises real tiling (multiple K/N/M tiles
    # plus row/col padding).
    B2, IN2, OUT2 = 384, 1024, 640
    k_x2, k_p2 = jax.random.split(jax.random.PRNGKey(1))
    x2 = jax.random.normal(k_x2, (B2, IN2), dtype=jnp.float32)
    w2, b2 = init_params(k_p2, IN2, OUT2)
    out2 = jax.block_until_ready(linear_forward(x2, w2, b2))
    ref2 = (x2 @ w2.T) / jnp.linalg.norm(x2, axis=1, keepdims=True) + b2
    assert jnp.allclose(out2, ref2, atol=1e-4, rtol=1e-4), "tiled mismatch"

    print("KERNEL_OK")
</pallas_src>

<mosaic_0001>
module attributes {stable_mosaic.version = 11 : i64} {
  func.func @_linear_norm_kernel(%arg0: i32, %arg1: i32, %arg2: i32, %arg3: memref<8x128xf32, #tpu.memory_space<vmem>>, %arg4: memref<128x128xf32, #tpu.memory_space<vmem>>, %arg5: memref<1x128xf32, #tpu.memory_space<vmem>>, %arg6: memref<8x128xf32, #tpu.memory_space<vmem>>, %arg7: memref<8x128xf32, #tpu.memory_space<vmem>>, %arg8: memref<8x1xf32, #tpu.memory_space<vmem>>) attributes {dimension_semantics = [#tpu.dimension_semantics<parallel>, #tpu.dimension_semantics<parallel>, #tpu.dimension_semantics<arbitrary>], iteration_bounds = array<i64: 1, 1, 1>, scalar_prefetch = 0 : i64, scratch_operands = 2 : i64, tpu.core_type = #tpu.core_type<tc>, window_params = [{transform_indices = @transform_0, window_bounds = array<i64: 8, 128>}, {transform_indices = @transform_1, window_bounds = array<i64: 128, 128>}, {transform_indices = @transform_2, window_bounds = array<i64: 1, 128>}, {transform_indices = @transform_3, window_bounds = array<i64: 8, 128>}]} {
    %c0_i32 = arith.constant 0 : i32
    %0 = arith.cmpi eq, %arg2, %c0_i32 : i32
    %1 = arith.extui %0 : i1 to i32
    %c0_i32_0 = arith.constant 0 : i32
    %2 = arith.cmpi ne, %1, %c0_i32_0 : i32
    scf.if %2 {
      %cst_15 = arith.constant 0.000000e+00 : f32
      %18 = vector.broadcast %cst_15 : f32 to vector<8x128xf32>
      %c0_16 = arith.constant 0 : index
      %c0_17 = arith.constant 0 : index
      %19 = vector.load %arg7[%c0_16, %c0_17] : memref<8x128xf32, #tpu.memory_space<vmem>>, vector<8x128xf32>
      tpu.vector_store %arg7[%c0_16, %c0_17], %18 {strides = array<i32>} : memref<8x128xf32, #tpu.memory_space<vmem>>, vector<8x128xf32>,
      %cst_18 = arith.constant 0.000000e+00 : f32
      %20 = vector.broadcast %cst_18 : f32 to vector<8x1xf32>
      %c0_19 = arith.constant 0 : index
      %c0_20 = arith.constant 0 : index
      %21 = vector.load %arg8[%c0_19, %c0_20] : memref<8x1xf32, #tpu.memory_space<vmem>>, vector<8x1xf32>
      tpu.vector_store %arg8[%c0_19, %c0_20], %20 {strides = array<i32>} : memref<8x1xf32, #tpu.memory_space<vmem>>, vector<8x1xf32>,
    } else {
    }
    %c0 = arith.constant 0 : index
    %c0_1 = arith.constant 0 : index
    %3 = vector.load %arg3[%c0, %c0_1] : memref<8x128xf32, #tpu.memory_space<vmem>>, vector<8x128xf32>
    %c0_2 = arith.constant 0 : index
    %c0_3 = arith.constant 0 : index
    %4 = vector.load %arg4[%c0_2, %c0_3] : memref<128x128xf32, #tpu.memory_space<vmem>>, vector<128x128xf32>
    %c0_4 = arith.constant 0 : index
    %c0_5 = arith.constant 0 : index
    %5 = vector.load %arg7[%c0_4, %c0_5] : memref<8x128xf32, #tpu.memory_space<vmem>>, vector<8x128xf32>
    %cst = arith.constant dense<0.000000e+00> : vector<8x128xf32>
    %6 = tpu.matmul %3, %4, %cst {dimension_numbers = #tpu.dot_dimension_numbers<[1], [0], [0], [1], [0, 0, 1, 1], [], []>} : vector<8x128xf32>, vector<128x128xf32>, vector<8x128xf32> -> vector<8x128xf32>
    %7 = arith.addf %5, %6 : vector<8x128xf32>
    %c0_6 = arith.constant 0 : index
    %c0_7 = arith.constant 0 : index
    %8 = vector.load %arg7[%c0_6, %c0_7] : memref<8x128xf32, #tpu.memory_space<vmem>>, vector<8x128xf32>
    tpu.vector_store %arg7[%c0_6, %c0_7], %7 {strides = array<i32>} : memref<8x128xf32, #tpu.memory_space<vmem>>, vector<8x128xf32>,
    %c0_8 = arith.constant 0 : index
    %c0_9 = arith.constant 0 : index
    %9 = vector.load %arg8[%c0_8, %c0_9] : memref<8x1xf32, #tpu.memory_space<vmem>>, vector<8x1xf32>
    %10 = arith.mulf %3, %3 : vector<8x128xf32>
    %cst_10 = arith.constant dense<0.000000e+00> : vector<8xf32>
    %11 = vector.multi_reduction <add>, %10, %cst_10 [1] : vector<8x128xf32> to vector<8xf32>
    %12 = vector.shape_cast %11 : vector<8xf32> to vector<8x1xf32>
    %13 = arith.addf %9, %12 : vector<8x1xf32>
    %c0_11 = arith.constant 0 : index
    %c0_12 = arith.constant 0 : index
    %14 = vector.load %arg8[%c0_11, %c0_12] : memref<8x1xf32, #tpu.memory_space<vmem>>, vector<8x1xf32>
    tpu.vector_store %arg8[%c0_11, %c0_12], %13 {strides = array<i32>} : memref<8x1xf32, #tpu.memory_space<vmem>>, vector<8x1xf32>,
    %c0_i32_13 = arith.constant 0 : i32
    %15 = arith.cmpi eq, %arg2, %c0_i32_13 : i32
    %16 = arith.extui %15 : i1 to i32
    %c0_i32_14 = arith.constant 0 : i32
    %17 = arith.cmpi ne, %16, %c0_i32_14 : i32
    scf.if %17 {
      %c0_15 = arith.constant 0 : index
      %c0_16 = arith.constant 0 : index
      %18 = vector.load %arg8[%c0_15, %c0_16] : memref<8x1xf32, #tpu.memory_space<vmem>>, vector<8x1xf32>
      %19 = math.rsqrt %18 : vector<8x1xf32>
      %c0_17 = arith.constant 0 : index
      %c0_18 = arith.constant 0 : index
      %20 = vector.load %arg7[%c0_17, %c0_18] : memref<8x128xf32, #tpu.memory_space<vmem>>, vector<8x128xf32>
      %21 = vector.broadcast %19 : vector<8x1xf32> to vector<8x128xf32>
      %22 = arith.mulf %20, %21 : vector<8x128xf32>
      %c0_19 = arith.constant 0 : index
      %c0_20 = arith.constant 0 : index
      %23 = vector.load %arg5[%c0_19, %c0_20] : memref<1x128xf32, #tpu.memory_space<vmem>>, vector<1x128xf32>
      %24 = vector.broadcast %23 : vector<1x128xf32> to vector<8x128xf32>
      %25 = arith.addf %22, %24 : vector<8x128xf32>
      %c0_21 = arith.constant 0 : index
      %c0_22 = arith.constant 0 : index
      %26 = vector.load %arg6[%c0_21, %c0_22] : memref<8x128xf32, #tpu.memory_space<vmem>>, vector<8x128xf32>
      tpu.vector_store %arg6[%c0_21, %c0_22], %25 {strides = array<i32>} : memref<8x128xf32, #tpu.memory_space<vmem>>, vector<8x128xf32>,
    } else {
    }
    return
  }
  func.func @transform_0(%arg0: i32, %arg1: i32, %arg2: i32) -> (i32, i32) {
    %c0_i32 = arith.constant 0 : i32
    return %arg0, %arg2 : i32, i32
  }
  func.func @transform_1(%arg0: i32, %arg1: i32, %arg2: i32) -> (i32, i32) {
    %c0_i32 = arith.constant 0 : i32
    return %arg2, %arg1 : i32, i32
  }
  func.func @transform_2(%arg0: i32, %arg1: i32, %arg2: i32) -> (i32, i32) {
    %c0_i32 = arith.constant 0 : i32
    %c0_i32_0 = arith.constant 0 : i32
    return %c0_i32, %arg1 : i32, i32
  }
  func.func @transform_3(%arg0: i32, %arg1: i32, %arg2: i32) -> (i32, i32) {
    %c0_i32 = arith.constant 0 : i32
    return %arg0, %arg1 : i32, i32
  }
}

</mosaic_0001>

<llo_original>
// kernel: tpu_custom_call.1
$region0: #{tpu_custom_call.1}
  #allocation0 [shape = 'u32[]', space=smem, size = 0x4, offset = 0x4, fixed_abs, tag = 'smem constant byte address 0x4 - core index']
  #allocation1 [shape = 'u32[72,128]{1,0:T(1,128)}', space=vmem, size = 0x9000, scoped, tag = 'internal scratch']
  #allocation2 [shape = 'f32[8,128]{1,0:T(8,128)}', space=vmem, size = 0x1000, scoped, tag = 'scratch operand']
  #allocation3 [shape = 'f32[8,1]{1,0:T(8,128)}', space=vmem, size = 0x1000, scoped, tag = 'scratch operand']
  %s0 = inlined_call_operand.hbm [shape: f32[8,128], index: 0, kind: input, shape index: {}]
  %s1 = inlined_call_operand.hbm [shape: f32[128,128], index: 1, kind: input, shape index: {}]
  %s2 = inlined_call_operand.vmem [shape: f32[1,128], index: 2, kind: input, shape index: {}]
  %s3 = inlined_call_operand.hbm [shape: f32[8,128], index: 3, kind: output, shape index: {}]
  %s4 = sld [smem:[#allocation0]]
  $region38: #{tpu_custom_call.1} parent=0
    _
  %s6 = ssub.s32 1, %s4
  %s7 = scalar_select 0, %s6, %s4
  $region1: #{tpu_custom_call.1} parent=0
    #allocation4 [shape = 'u8[4096]{0}', space=vmem, size = 0x1000, scoped, tag = 'input window, operand 0, single buffered']
    #allocation5 [shape = 's32[1]{0}', space=sflag, size = 0x4, scoped, tag = 'scoped memory for tpu_custom_call.1']
    #allocation6 [shape = 's32[1]{0}', space=sflag, size = 0x4, scoped, tag = 'scoped memory for tpu_custom_call.1']
    #allocation7 [shape = 'u8[65536]{0}', space=vmem, size = 0x10000, scoped, tag = 'input window, operand 1, single buffered']
    #allocation8 [shape = 's32[1]{0}', space=sflag, size = 0x4, scoped, tag = 'scoped memory for tpu_custom_call.1']
    #allocation9 [shape = 'u8[4096]{0}', space=vmem, size = 0x1000, scoped, tag = 'output window, operand 0, single buffered']
    %8 = vsyncpa [#allocation5], 0
    %9 = vsyncpa [#allocation8], 0
    %10 = vsyncpa [#allocation6], 0
    // Predicated region
    $region2: #{tpu_custom_call.1} parent=1 // pred_check
      _
    $region3: #{tpu_custom_call.1} parent=1 // pred_check_branch
      %12 = sbr.rel (0) target = $region5
    $region4: #{tpu_custom_call.1} parent=1 // pred_region
      %14 = vsyncadd [#allocation5], 0
      %s16 = sshll.u32 %s0, 4
      %s17 = int_to_ptr.hbm [resolvable:$true] %s16
      %s18 = sshll.u32 [#allocation4], 4
      %s19 = int_to_ptr.vmem [resolvable:$true] %s18
      %21 = dma.hbm_to_vmem [thread:$0]  %s17, 128, %s19, [#allocation5]
    $region5: #{tpu_custom_call.1} parent=1 // pred_fallthru
      _
    // Predicated region
    $region6: #{tpu_custom_call.1} parent=1 // pred_check
      _
    $region7: #{tpu_custom_call.1} parent=1 // pred_check_branch
      %23 = sbr.rel (0) target = $region9
    $region8: #{tpu_custom_call.1} parent=1 // pred_region
      %25 = vsyncadd [#allocation8], 0
      %s26 = sshll.u32 %s1, 4
      %s27 = int_to_ptr.hbm [resolvable:$true] %s26
      %s28 = sshll.u32 [#allocation7], 4
      %s29 = int_to_ptr.vmem [resolvable:$true] %s28
      %34 = dma.hbm_to_vmem [thread:$0]  %s27, 2048, %s29, [#allocation8], 128, 128, 8
    $region9: #{tpu_custom_call.1} parent=1 // pred_fallthru
      _
    // Predicated region
    $region10: #{tpu_custom_call.1} parent=1 // pred_check
      _
    $region11: #{tpu_custom_call.1} parent=1 // pred_check_branch
      %36 = sbr.rel (0) target = $region13
    $region12: #{tpu_custom_call.1} parent=1 // pred_region
      _
    $region13: #{tpu_custom_call.1} parent=1 // pred_fallthru
      _
    // Predicated region
    $region14: #{tpu_custom_call.1} parent=1 // pred_check
      _
    $region15: #{tpu_custom_call.1} parent=1 // pred_check_branch
      %38 = sbr.rel (0) target = $region17
    $region16: #{tpu_custom_call.1} parent=1 // pred_region
      %40 = dma.done [#allocation5], 128
    $region17: #{tpu_custom_call.1} parent=1 // pred_fallthru
      _
    // Predicated region
    $region18: #{tpu_custom_call.1} parent=1 // pred_check
      _
    $region19: #{tpu_custom_call.1} parent=1 // pred_check_branch
      %42 = sbr.rel (0) target = $region21
    $region20: #{tpu_custom_call.1} parent=1 // pred_region
      %44 = dma.done [#allocation8], 2048
    $region21: #{tpu_custom_call.1} parent=1 // pred_fallthru
      _
    %p45 = scmp.eq.s32.totalorder 0, 0
    // Predicated region
    $region22: #{tpu_custom_call.1} parent=1 // pred_check
      %p46 = pneg %p45
    $region23: #{tpu_custom_call.1} parent=1 // pred_check_branch
      %48 = sbr.rel (%p46) target = $region25
    $region24: #{tpu_custom_call.1} parent=1 // pred_region
      %49 = vst [vmem:[#allocation2] sm:$0xff] 0.0
      %vm50 = vcmask 7168
      %51 = vst.msk [vmem:[#allocation3] sm:$0xff] %vm50, 0.0
    $region25: #{tpu_custom_call.1} parent=1 // pred_fallthru
      _
    %v52 = vld [vmem:[#allocation4] sm:$0xff]
    %v53 = vld [vmem:[#allocation7] sm:$0xff]
    %v54 = vld [vmem:[#allocation7 + $0x8] sm:$0xff]
    %v55 = vld [vmem:[#allocation7 + $0x10] sm:$0xff]
    %v56 = vld [vmem:[#allocation7 + $0x18] sm:$0xff]
    %v57 = vld [vmem:[#allocation7 + $0x20] sm:$0xff]
    %v58 = vld [vmem:[#allocation7 + $0x28] sm:$0xff]
    %v59 = vld [vmem:[#allocation7 + $0x30] sm:$0xff]
    %v60 = vld [vmem:[#allocation7 + $0x38] sm:$0xff]
    %v61 = vld [vmem:[#allocation7 + $0x40] sm:$0xff]
    %v62 = vld [vmem:[#allocation7 + $0x48] sm:$0xff]
    %v63 = vld [vmem:[#allocation7 + $0x50] sm:$0xff]
    %v64 = vld [vmem:[#allocation7 + $0x58] sm:$0xff]
    %v65 = vld [vmem:[#allocation7 + $0x60] sm:$0xff]
    %v66 = vld [vmem:[#allocation7 + $0x68] sm:$0xff]
    %v67 = vld [vmem:[#allocation7 + $0x70] sm:$0xff]
    %v68 = vld [vmem:[#allocation7 + $0x78] sm:$0xff]
    %v69 = vld [vmem:[#allocation2] sm:$0xff]
    %70 = vmatpush.msra.mxu0 %v68
    %71 = vmatpush.msra.mxu0 %v67
    %72 = vmatpush.msra.mxu0 %v66
    %73 = vmatpush.msra.mxu0 %v65
    %74 = vmatpush.msra.mxu0 %v64
    %75 = vmatpush.msra.mxu0 %v63
    %76 = vmatpush.msra.mxu0 %v62
    %77 = vmatpush.msra.mxu0 %v61
    %78 = vmatpush.msra.mxu0 %v60
    %79 = vmatpush.msra.mxu0 %v59
    %80 = vmatpush.msra.mxu0 %v58
    %81 = vmatpush.msra.mxu0 %v57
    %82 = vmatpush.msra.mxu0 %v56
    %83 = vmatpush.msra.mxu0 %v55
    %84 = vmatpush.msra.mxu0 %v54
    %85 = vmatpush.msra.mxu0 %v53
    %86 = vmatmul.f32.gmra.mxu0 %v52
    %v87 = vpop.f32.mrf.mxu0
    %v88 = vadd.f32 0.0, %v87
    %89 = vdwg.mxu0
    %v90 = vadd.f32 %v69, %v88
    %91 = vst [vmem:[#allocation2] sm:$0xff] %v90
    %v92 = vld [vmem:[#allocation3] sm:$0xff]
    %v93 = vmul.f32 %v52, %v52
    %94 = vadd.xlane.f32.xlu0 %v93
    %v95 = vpop.xlane.xlu0 %94
    %v96 = vadd.f32 %v92, %v95
    %vm97 = vcmask 7168
    %98 = vst.msk [vmem:[#allocation3] sm:$0xff] %vm97, %v96
    // Predicated region
    $region26: #{tpu_custom_call.1} parent=1 // pred_check
      %p99 = pneg %p45
    $region27: #{tpu_custom_call.1} parent=1 // pred_check_branch
      %101 = sbr.rel (%p99) target = $region29
    $region28: #{tpu_custom_call.1} parent=1 // pred_region
      %v102 = vld [vmem:[#allocation3] sm:$0xff]
      %v103 = vrsqrt.pop %v102
      %v104 = vmul.f32 %v103, %v102
      %v105 = vmul.f32 %v104, %v103
      %v106 = vmul.f32 0.5, %v105
      %v107 = vsub.f32 1.5, %v106
      %v108 = vmul.f32 %v103, %v107
      %vm109 = vweird.f32 %v102
      %vm110 = vweird.f32 %v103
      %vm111 = vmor %vm109, %vm110
      %v112 = vsel %vm111, %v103, %v108
      %v113 = vld [vmem:[#allocation2] sm:$0xff]
      %115 = vset.pattern.permute.xlu0 0
      %116 = vperm.xlu0 %115, %v112
      %v117 = vpop.permute.xlu0 %116
      %v119 = vmul.f32 %v113, %v117
      %v120 = vld [vmem:[%s2] sm:$0x1]
      %v122 = vperm.slane %v120, 0
      %v124 = vadd.f32 %v119, %v122
      %125 = vst [vmem:[#allocation9] sm:$0xff] %v124
    $region29: #{tpu_custom_call.1} parent=1 // pred_fallthru
      _
    // Predicated region
    $region30: #{tpu_custom_call.1} parent=1 // pred_check
      _
    $region31: #{tpu_custom_call.1} parent=1 // pred_check_branch
      %127 = sbr.rel (0) target = $region33
    $region32: #{tpu_custom_call.1} parent=1 // pred_region
      %129 = vsyncadd [#allocation6], 0
      %s131 = sshll.u32 [#allocation9], 4
      %s132 = int_to_ptr.vmem [resolvable:$true] %s131
      %s133 = sshll.u32 %s3, 4
      %s134 = int_to_ptr.hbm [resolvable:$true] %s133
      %136 = dma.vmem_to_hbm [thread:$0]  %s132, 128, %s134, [#allocation6]
    $region33: #{tpu_custom_call.1} parent=1 // pred_fallthru
      _
    // Predicated region
    $region34: #{tpu_custom_call.1} parent=1 // pred_check
      _
    $region35: #{tpu_custom_call.1} parent=1 // pred_check_branch
      %138 = sbr.rel (0) target = $region37
    $region36: #{tpu_custom_call.1} parent=1 // pred_region
      %140 = dma.done [#allocation6], 128
    $region37: #{tpu_custom_call.1} parent=1 // pred_fallthru
      _
    %141 = vsyncpa [#allocation5], 1
    %142 = vsyncpa [#allocation8], 1
    %143 = vsyncpa [#allocation6], 1

</llo_original>
